<compile_context>
chip_gen: v6e
topology: v6e:2x2x1
jax: 0.10.0
libtpu: 0.0.40
codegen_flags: <defaults>
</compile_context>

<pallas_src>
import functools
import math
from typing import NamedTuple, Optional

import jax
import jax.numpy as jnp
from jax.experimental import pallas as pl
from jax.experimental.pallas import tpu as pltpu


def _round_up(x: int, m: int) -> int:
    return (x + m - 1) // m * m


def _vmem_capacity_bytes() -> int:
    """Per-core VMEM capacity; conservative fallback if the query fails."""
    try:
        info = pltpu.get_tpu_info()
        cap = int(getattr(info, "vmem_capacity_bytes"))
        if cap > 0:
            return cap
    except Exception:
        pass
    return 64 * 1024 * 1024  # v7x per-TensorCore (most restrictive)


class LoRAParams(NamedTuple):
    wT: jax.Array              # (D_in_pad, D_out_pad)   base weight, transposed+padded
    b2: jax.Array              # (1, D_out_pad)          bias (fp32)
    waT: Optional[jax.Array]   # (D_in_pad, R_pad) or None when folded
    wbT: Optional[jax.Array]   # (R_pad, D_out_pad) or None when folded
    d_in: int
    d_out: int


def prepare_lora_params(w, b, w_a, w_b, dtype=None, fold=False) -> LoRAParams:
    """One-time weight prep (do NOT call per forward step).

    Transposes PyTorch-convention (out, in) weights to (in, out), zero-pads
    D_in / D_out / rank to multiples of 128, optionally casts (e.g. bf16 on
    v6e/v7x) and optionally folds the frozen LoRA adapter into the base weight.
    """
    d_out, d_in = w.shape
    r = w_a.shape[0]
    d_in_pad = _round_up(d_in, 128)
    d_out_pad = _round_up(d_out, 128)
    r_pad = _round_up(r, 128)

    compute_dtype = dtype if dtype is not None else w.dtype

    if fold:
        # Frozen-adapter inference: fold W_eff^T = W^T + Wa^T @ Wb^T once; the
        # kernel then runs a plain tiled linear (no LoRA dots, no extra DMAs).
        w_eff_T = (w.T.astype(jnp.float32)
                   + w_a.T.astype(jnp.float32) @ w_b.T.astype(jnp.float32))
        wT = (jnp.zeros((d_in_pad, d_out_pad), jnp.float32)
              .at[:d_in, :d_out].set(w_eff_T).astype(compute_dtype))
        waT = None
        wbT = None
    else:
        wT = (jnp.zeros((d_in_pad, d_out_pad), jnp.float32)
              .at[:d_in, :d_out].set(w.T.astype(jnp.float32)).astype(compute_dtype))
        waT = (jnp.zeros((d_in_pad, r_pad), jnp.float32)
               .at[:d_in, :r].set(w_a.T.astype(jnp.float32)).astype(compute_dtype))
        wbT = (jnp.zeros((r_pad, d_out_pad), jnp.float32)
               .at[:r, :d_out].set(w_b.T.astype(jnp.float32)).astype(compute_dtype))

    b2 = (jnp.zeros((1, d_out_pad), jnp.float32)
          .at[:, :d_out].set(b.reshape(1, d_out).astype(jnp.float32)))

    return LoRAParams(wT=wT, b2=b2, waT=waT, wbT=wbT, d_in=d_in, d_out=d_out)


def _choose_tiles(m, d_in_pad, d_out_pad, r_pad, in_isz, out_isz, vmem_cap):
    """Largest (tm, tn, tk) whose double-buffered footprint fits the VMEM budget."""
    budget = int(vmem_cap * 0.55)          # leave headroom for compiler/internal scratch
    sub = 32 if in_isz == 1 else (16 if in_isz == 2 else 8)   # sublane packing
    tm_full = max(sub, _round_up(m, sub))

    tm_cands = []
    for t in (512, 384, 256, 128, 64, 32, 16, 8):
        if t % sub:
            continue
        c = min(t, tm_full)
        if c not in tm_cands:
            tm_cands.append(c)

    tn_cands = [t for t in range(min(1024, d_out_pad), 127, -128) if d_out_pad % t == 0]
    tk_cands = [t for t in range(min(8192, d_in_pad), 127, -128) if d_in_pad % t == 0]

    def footprint(tm, tn, tk):
        k_tiled = tk < d_in_pad
        f = 2 * tm * tk * in_isz           # x block (double-buffered)
        f += 2 * tk * tn * in_isz          # W^T slab
        f += 2 * tn * 4                    # bias (fp32)
        f += 2 * tm * tn * out_isz         # out block
        if r_pad:
            f += 2 * tm * r_pad * in_isz   # a = x @ Wa^T (precomputed, streamed)
            f += 2 * r_pad * tn * in_isz   # Wb^T slab
        if k_tiled:
            f += tm * tn * 4               # fp32 accumulator scratch
        return f

    # Prefer big row tiles (cuts weight re-streaming), then wide lane-dense
    # output tiles, then MXU-friendly K chunks (>= 512 if we can afford it).
    for tk_floor in (min(d_in_pad, 512), 128):
        for tm in tm_cands:
            for tn in tn_cands:
                for tk in tk_cands:
                    if tk < tk_floor:
                        break
                    if footprint(tm, tn, tk) <= budget:
                        return tm, tn, tk
    return tm_cands[-1], 128, 128


def _lora_linear_kernel(*refs, k_tiled: bool, has_lora: bool):
    """One (row-tile, col-tile[, k-tile]) block of y = x @ W^T + b [+ a @ Wb^T]."""
    idx = 0
    x_ref = refs[idx]; idx += 1
    wT_ref = refs[idx]; idx += 1
    b_ref = refs[idx]; idx += 1
    if has_lora:
        a_ref = refs[idx]; idx += 1
        wbT_ref = refs[idx]; idx += 1
    o_ref = refs[idx]; idx += 1
    acc_ref = refs[idx] if k_tiled else None

    def epilogue(base_f32):
        out = base_f32 + b_ref[...].astype(jnp.float32)
        if has_lora:
            # a and Wb^T stay in the compute dtype (bf16 on v6e/v7x) -> fast MXU;
            # accumulation is fp32 via preferred_element_type.
            out = out + jnp.dot(a_ref[...], wbT_ref[...],
                                preferred_element_type=jnp.float32)
        o_ref[...] = out.astype(o_ref.dtype)

    if k_tiled:
        k = pl.program_id(2)

        @pl.when(k == 0)
        def _():
            acc_ref[...] = jnp.zeros_like(acc_ref)

        acc_ref[...] += jnp.dot(x_ref[...], wT_ref[...],
                                preferred_element_type=jnp.float32)

        @pl.when(k == pl.num_programs(2) - 1)
        def _():
            epilogue(acc_ref[...])
    else:
        epilogue(jnp.dot(x_ref[...], wT_ref[...],
                         preferred_element_type=jnp.float32))


def lora_layer(x, params: LoRAParams, *, tile_override=None):
    """Apply the LoRA'd linear to x of shape (..., D_in). Returns (..., D_out)."""
    *lead, d_in = x.shape
    assert d_in == params.d_in, f"expected last dim {params.d_in}, got {d_in}"
    d_in_pad, d_out_pad = params.wT.shape
    d_out = params.d_out

    compute_dtype = params.wT.dtype
    out_dtype = x.dtype
    in_isz = jnp.dtype(compute_dtype).itemsize
    out_isz = jnp.dtype(out_dtype).itemsize

    has_lora = params.waT is not None
    r_pad = params.waT.shape[1] if has_lora else 0

    m = int(math.prod(lead)) if lead else 1
    x2 = x.reshape(m, d_in).astype(compute_dtype)

    vmem_cap = _vmem_capacity_bytes()
    if tile_override is not None:
        tm, tn, tk = tile_override
    else:
        tm, tn, tk = _choose_tiles(m, d_in_pad, d_out_pad, r_pad,
                                   in_isz, out_isz, vmem_cap)

    m_pad = _round_up(m, tm)
    pad_rows, pad_cols = m_pad - m, d_in_pad - d_in
    if pad_rows or pad_cols:
        x2 = jnp.pad(x2, ((0, pad_rows), (0, pad_cols)))

    k_tiled = tk < d_in_pad
    grid_m = m_pad // tm
    grid_n = d_out_pad // tn
    grid_k = d_in_pad // tk

    operands = [x2, params.wT, params.b2]
    if has_lora:
        # LoRA down-projection hoisted out of the kernel: tiny XLA matmul,
        # fp32 accumulation, result streamed into the kernel per row tile.
        a = jnp.dot(x2, params.waT,
                    preferred_element_type=jnp.float32).astype(compute_dtype)
        operands += [a, params.wbT]

    if k_tiled:
        grid = (grid_m, grid_n, grid_k)
        x_spec = pl.BlockSpec((tm, tk), lambda i, j, k: (i, k))
        wT_spec = pl.BlockSpec((tk, tn), lambda i, j, k: (k, j))
        b_spec = pl.BlockSpec((1, tn), lambda i, j, k: (0, j))
        a_spec = pl.BlockSpec((tm, r_pad), lambda i, j, k: (i, 0))
        wbT_spec = pl.BlockSpec((r_pad, tn), lambda i, j, k: (0, j))
        out_spec = pl.BlockSpec((tm, tn), lambda i, j, k: (i, j))
        scratch = [pltpu.VMEM((tm, tn), jnp.float32)]
        dim_sem = ("parallel", "parallel", "arbitrary")
    else:
        grid = (grid_m, grid_n)
        x_spec = pl.BlockSpec((tm, d_in_pad), lambda i, j: (i, 0))
        wT_spec = pl.BlockSpec((d_in_pad, tn), lambda i, j: (0, j))
        b_spec = pl.BlockSpec((1, tn), lambda i, j: (0, j))
        a_spec = pl.BlockSpec((tm, r_pad), lambda i, j: (i, 0))
        wbT_spec = pl.BlockSpec((r_pad, tn), lambda i, j: (0, j))
        out_spec = pl.BlockSpec((tm, tn), lambda i, j: (i, j))
        scratch = []
        dim_sem = ("parallel", "parallel")

    in_specs = [x_spec, wT_spec, b_spec]
    if has_lora:
        in_specs += [a_spec, wbT_spec]

    # HBM traffic estimate: W^T / Wb^T / bias are re-streamed once per row tile;
    # x is re-streamed once per output-column tile when K is tiled.
    bytes_accessed = (
        m_pad * d_in_pad * in_isz * (grid_n if k_tiled else 1)      # x
        + grid_m * d_in_pad * d_out_pad * in_isz                    # W^T
        + grid_m * d_out_pad * 4                                    # bias
        + m_pad * d_out_pad * out_isz                               # out
    )
    flops = 2 * m_pad * d_in_pad * d_out_pad
    if has_lora:
        bytes_accessed += (m_pad * r_pad * in_isz                   # a
                           + grid_m * r_pad * d_out_pad * in_isz)   # Wb^T
        flops += 2 * m_pad * r_pad * d_out_pad
    cost = pl.CostEstimate(flops=flops, transcendentals=0,
                           bytes_accessed=bytes_accessed)

    kernel = functools.partial(_lora_linear_kernel,
                               k_tiled=k_tiled, has_lora=has_lora)

    out = pl.pallas_call(
        kernel,
        out_shape=jax.ShapeDtypeStruct((m_pad, d_out_pad), out_dtype),
        grid_spec=pltpu.PrefetchScalarGridSpec(
            num_scalar_prefetch=0,
            grid=grid,
            in_specs=in_specs,
            out_specs=out_spec,
            scratch_shapes=scratch,
        ),
        compiler_params=pltpu.CompilerParams(
            dimension_semantics=dim_sem,
            vmem_limit_bytes=min(int(vmem_cap * 3 // 4), 128 * 1024 * 1024),
        ),
        cost_estimate=cost,
    )(*operands)

    out = out[:m, :d_out]
    return out.reshape(*lead, d_out)


if __name__ == "__main__":
    key = jax.random.PRNGKey(0)
    keys = jax.random.split(key, 12)

    # --- Test 1: separate LoRA path (adapters trainable), small shapes -------
    B, S, D, R = 2, 8, 32, 4
    x = jax.random.normal(keys[0], (B, S, D), dtype=jnp.float32)
    w = jax.random.normal(keys[1], (D, D), dtype=jnp.float32) * 0.1    # nn.Linear(D, D).weight
    b = jax.random.normal(keys[2], (D,), dtype=jnp.float32) * 0.1      # nn.Linear(D, D).bias
    w_a = jax.random.normal(keys[3], (R, D), dtype=jnp.float32) * 0.1  # nn.Linear(D, R, bias=False)
    w_b = jax.random.normal(keys[4], (D, R), dtype=jnp.float32) * 0.1  # nn.Linear(R, D, bias=False)

    ref = (x @ w.T + b) + ((x @ w_a.T) @ w_b.T)

    params = prepare_lora_params(w, b, w_a, w_b)
    y = jax.block_until_ready(lora_layer(x, params))
    assert jnp.allclose(y, ref, atol=1e-3, rtol=1e-3), "mismatch (separate LoRA path)"

    # --- Test 2: folded frozen-adapter inference path -------------------------
    params_f = prepare_lora_params(w, b, w_a, w_b, fold=True)
    y_f = jax.block_until_ready(lora_layer(x, params_f))
    assert jnp.allclose(y_f, ref, atol=1e-3, rtol=1e-3), "mismatch (folded path)"

    # --- Test 3: exercise the K-tiled accumulator path on a small shape -------
    D_in3, D_out3, R3 = 256, 64, 4
    x3 = jax.random.normal(keys[5], (B, S, D_in3), dtype=jnp.float32)
    w3 = jax.random.normal(keys[6], (D_out3, D_in3), dtype=jnp.float32) * 0.05
    b3 = jax.random.normal(keys[7], (D_out3,), dtype=jnp.float32) * 0.1
    w_a3 = jax.random.normal(keys[8], (R3, D_in3), dtype=jnp.float32) * 0.05
    w_b3 = jax.random.normal(keys[9], (D_out3, R3), dtype=jnp.float32) * 0.05

    ref3 = (x3 @ w3.T + b3) + ((x3 @ w_a3.T) @ w_b3.T)

    params3 = prepare_lora_params(w3, b3, w_a3, w_b3)
    y3 = jax.block_until_ready(lora_layer(x3, params3, tile_override=(16, 128, 128)))
    assert jnp.allclose(y3, ref3, atol=1e-3, rtol=1e-3), "mismatch (K-tiled path)"

    print("KERNEL_OK")
</pallas_src>

<mosaic_0001>
module attributes {stable_mosaic.version = 11 : i64} {
  func.func @_lora_linear_kernel(%arg0: i32, %arg1: i32, %arg2: memref<16x128xf32, #tpu.memory_space<vmem>>, %arg3: memref<128x128xf32, #tpu.memory_space<vmem>>, %arg4: memref<1x128xf32, #tpu.memory_space<vmem>>, %arg5: memref<16x128xf32, #tpu.memory_space<vmem>>, %arg6: memref<128x128xf32, #tpu.memory_space<vmem>>, %arg7: memref<16x128xf32, #tpu.memory_space<vmem>>) attributes {dimension_semantics = [#tpu.dimension_semantics<parallel>, #tpu.dimension_semantics<parallel>], iteration_bounds = array<i64: 1, 1>, scalar_prefetch = 0 : i64, scratch_operands = 0 : i64, tpu.core_type = #tpu.core_type<tc>, window_params = [{transform_indices = @transform_0, window_bounds = array<i64: 16, 128>}, {transform_indices = @transform_1, window_bounds = array<i64: 128, 128>}, {transform_indices = @transform_2, window_bounds = array<i64: 1, 128>}, {transform_indices = @transform_3, window_bounds = array<i64: 16, 128>}, {transform_indices = @transform_4, window_bounds = array<i64: 128, 128>}, {transform_indices = @transform_5, window_bounds = array<i64: 16, 128>}]} {
    %c0 = arith.constant 0 : index
    %c0_0 = arith.constant 0 : index
    %0 = vector.load %arg2[%c0, %c0_0] : memref<16x128xf32, #tpu.memory_space<vmem>>, vector<16x128xf32>
    %c0_1 = arith.constant 0 : index
    %c0_2 = arith.constant 0 : index
    %1 = vector.load %arg3[%c0_1, %c0_2] : memref<128x128xf32, #tpu.memory_space<vmem>>, vector<128x128xf32>
    %cst = arith.constant dense<0.000000e+00> : vector<16x128xf32>
    %2 = tpu.matmul %0, %1, %cst {dimension_numbers = #tpu.dot_dimension_numbers<[1], [0], [0], [1], [0, 0, 1, 1], [], []>} : vector<16x128xf32>, vector<128x128xf32>, vector<16x128xf32> -> vector<16x128xf32>
    %c0_3 = arith.constant 0 : index
    %c0_4 = arith.constant 0 : index
    %3 = vector.load %arg4[%c0_3, %c0_4] : memref<1x128xf32, #tpu.memory_space<vmem>>, vector<1x128xf32>
    %4 = vector.broadcast %3 : vector<1x128xf32> to vector<16x128xf32>
    %5 = arith.addf %2, %4 : vector<16x128xf32>
    %c0_5 = arith.constant 0 : index
    %c0_6 = arith.constant 0 : index
    %6 = vector.load %arg5[%c0_5, %c0_6] : memref<16x128xf32, #tpu.memory_space<vmem>>, vector<16x128xf32>
    %c0_7 = arith.constant 0 : index
    %c0_8 = arith.constant 0 : index
    %7 = vector.load %arg6[%c0_7, %c0_8] : memref<128x128xf32, #tpu.memory_space<vmem>>, vector<128x128xf32>
    %cst_9 = arith.constant dense<0.000000e+00> : vector<16x128xf32>
    %8 = tpu.matmul %6, %7, %cst_9 {dimension_numbers = #tpu.dot_dimension_numbers<[1], [0], [0], [1], [0, 0, 1, 1], [], []>} : vector<16x128xf32>, vector<128x128xf32>, vector<16x128xf32> -> vector<16x128xf32>
    %9 = arith.addf %5, %8 : vector<16x128xf32>
    %c0_10 = arith.constant 0 : index
    %c0_11 = arith.constant 0 : index
    %10 = vector.load %arg7[%c0_10, %c0_11] : memref<16x128xf32, #tpu.memory_space<vmem>>, vector<16x128xf32>
    tpu.vector_store %arg7[%c0_10, %c0_11], %9 {strides = array<i32>} : memref<16x128xf32, #tpu.memory_space<vmem>>, vector<16x128xf32>,
    return
  }
  func.func @transform_0(%arg0: i32, %arg1: i32) -> (i32, i32) {
    %c0_i32 = arith.constant 0 : i32
    %c0_i32_0 = arith.constant 0 : i32
    return %arg0, %c0_i32 : i32, i32
  }
  func.func @transform_1(%arg0: i32, %arg1: i32) -> (i32, i32) {
    %c0_i32 = arith.constant 0 : i32
    %c0_i32_0 = arith.constant 0 : i32
    return %c0_i32, %arg1 : i32, i32
  }
  func.func @transform_2(%arg0: i32, %arg1: i32) -> (i32, i32) {
    %c0_i32 = arith.constant 0 : i32
    %c0_i32_0 = arith.constant 0 : i32
    return %c0_i32, %arg1 : i32, i32
  }
  func.func @transform_3(%arg0: i32, %arg1: i32) -> (i32, i32) {
    %c0_i32 = arith.constant 0 : i32
    %c0_i32_0 = arith.constant 0 : i32
    return %arg0, %c0_i32 : i32, i32
  }
  func.func @transform_4(%arg0: i32, %arg1: i32) -> (i32, i32) {
    %c0_i32 = arith.constant 0 : i32
    %c0_i32_0 = arith.constant 0 : i32
    return %c0_i32, %arg1 : i32, i32
  }
  func.func @transform_5(%arg0: i32, %arg1: i32) -> (i32, i32) {
    %c0_i32 = arith.constant 0 : i32
    return %arg0, %arg1 : i32, i32
  }
}

</mosaic_0001>

<llo_original>
// kernel: tpu_custom_call.1
$region0: #{tpu_custom_call.1}
  #allocation0 [shape = 'u32[]', space=smem, size = 0x4, offset = 0x4, fixed_abs, tag = 'smem constant byte address 0x4 - core index']
  #allocation1 [shape = 'u32[144,128]{1,0:T(1,128)}', space=vmem, size = 0x12000, scoped, tag = 'internal scratch']
  %s0 = inlined_call_operand.hbm [shape: f32[16,128], index: 0, kind: input, shape index: {}]
  %s1 = inlined_call_operand.hbm [shape: f32[128,128], index: 1, kind: input, shape index: {}]
  %s2 = inlined_call_operand.vmem [shape: f32[1,128], index: 2, kind: input, shape index: {}]
  %s3 = inlined_call_operand.hbm [shape: f32[16,128], index: 3, kind: input, shape index: {}]
  %s4 = inlined_call_operand.hbm [shape: f32[128,128], index: 4, kind: input, shape index: {}]
  %s5 = inlined_call_operand.hbm [shape: f32[16,128], index: 5, kind: output, shape index: {}]
  %s6 = sld [smem:[#allocation0]]
  $region46: #{tpu_custom_call.1} parent=0
    _
  %s8 = ssub.s32 1, %s6
  %s9 = scalar_select 0, %s8, %s6
  $region1: #{tpu_custom_call.1} parent=0
    #allocation2 [shape = 'u8[8192]{0}', space=vmem, size = 0x2000, scoped, tag = 'input window, operand 0, single buffered']
    #allocation3 [shape = 's32[1]{0}', space=sflag, size = 0x4, scoped, tag = 'scoped memory for tpu_custom_call.1']
    #allocation4 [shape = 's32[1]{0}', space=sflag, size = 0x4, scoped, tag = 'scoped memory for tpu_custom_call.1']
    #allocation5 [shape = 'u8[65536]{0}', space=vmem, size = 0x10000, scoped, tag = 'input window, operand 1, single buffered']
    #allocation6 [shape = 's32[1]{0}', space=sflag, size = 0x4, scoped, tag = 'scoped memory for tpu_custom_call.1']
    #allocation7 [shape = 'u8[8192]{0}', space=vmem, size = 0x2000, scoped, tag = 'input window, operand 3, single buffered']
    #allocation8 [shape = 'u8[65536]{0}', space=vmem, size = 0x10000, scoped, tag = 'input window, operand 4, single buffered']
    #allocation9 [shape = 's32[1]{0}', space=sflag, size = 0x4, scoped, tag = 'scoped memory for tpu_custom_call.1']
    #allocation10 [shape = 'u8[8192]{0}', space=vmem, size = 0x2000, scoped, tag = 'output window, operand 0, single buffered']
    %10 = vsyncpa [#allocation3], 0
    %11 = vsyncpa [#allocation6], 0
    %12 = vsyncpa [#allocation9], 0
    %13 = vsyncpa [#allocation4], 0
    // Predicated region
    $region2: #{tpu_custom_call.1} parent=1 // pred_check
      _
    $region3: #{tpu_custom_call.1} parent=1 // pred_check_branch
      %15 = sbr.rel (0) target = $region5
    $region4: #{tpu_custom_call.1} parent=1 // pred_region
      %s17 = ssub.s32 256, 256
      %18 = vsyncadd [#allocation3], %s17
      %s19 = sshll.u32 [#allocation2], 4
      %s20 = int_to_ptr.vmem [resolvable:$true] %s19
      %25 = dma.hbm_to_vmem [thread:$0]  %s0, 256, %s20, [#allocation3], 128, 128, 8
    $region5: #{tpu_custom_call.1} parent=1 // pred_fallthru
      _
    // Predicated region
    $region6: #{tpu_custom_call.1} parent=1 // pred_check
      _
    $region7: #{tpu_custom_call.1} parent=1 // pred_check_branch
      %27 = sbr.rel (0) target = $region9
    $region8: #{tpu_custom_call.1} parent=1 // pred_region
      %s29 = ssub.s32 2048, 2048
      %30 = vsyncadd [#allocation6], %s29
      %s31 = sshll.u32 [#allocation5], 4
      %s32 = int_to_ptr.vmem [resolvable:$true] %s31
      %37 = dma.hbm_to_vmem [thread:$0]  %s1, 2048, %s32, [#allocation6], 128, 128, 8
    $region9: #{tpu_custom_call.1} parent=1 // pred_fallthru
      _
    // Predicated region
    $region10: #{tpu_custom_call.1} parent=1 // pred_check
      _
    $region11: #{tpu_custom_call.1} parent=1 // pred_check_branch
      %39 = sbr.rel (0) target = $region13
    $region12: #{tpu_custom_call.1} parent=1 // pred_region
      _
    $region13: #{tpu_custom_call.1} parent=1 // pred_fallthru
      _
    // Predicated region
    $region14: #{tpu_custom_call.1} parent=1 // pred_check
      _
    $region15: #{tpu_custom_call.1} parent=1 // pred_check_branch
      %41 = sbr.rel (0) target = $region17
    $region16: #{tpu_custom_call.1} parent=1 // pred_region
      %s43 = ssub.s32 256, 256
      %44 = vsyncadd [#allocation6], %s43
      %s45 = sshll.u32 [#allocation7], 4
      %s46 = int_to_ptr.vmem [resolvable:$true] %s45
      %51 = dma.hbm_to_vmem [thread:$0]  %s3, 256, %s46, [#allocation6], 128, 128, 8
    $region17: #{tpu_custom_call.1} parent=1 // pred_fallthru
      _
    // Predicated region
    $region18: #{tpu_custom_call.1} parent=1 // pred_check
      _
    $region19: #{tpu_custom_call.1} parent=1 // pred_check_branch
      %53 = sbr.rel (0) target = $region21
    $region20: #{tpu_custom_call.1} parent=1 // pred_region
      %s55 = ssub.s32 2048, 2048
      %56 = vsyncadd [#allocation9], %s55
      %s57 = sshll.u32 [#allocation8], 4
      %s58 = int_to_ptr.vmem [resolvable:$true] %s57
      %63 = dma.hbm_to_vmem [thread:$0]  %s4, 2048, %s58, [#allocation9], 128, 128, 8
    $region21: #{tpu_custom_call.1} parent=1 // pred_fallthru
      _
    // Predicated region
    $region22: #{tpu_custom_call.1} parent=1 // pred_check
      _
    $region23: #{tpu_custom_call.1} parent=1 // pred_check_branch
      %65 = sbr.rel (0) target = $region25
    $region24: #{tpu_custom_call.1} parent=1 // pred_region
      %66 = dma.done [#allocation3], 256
    $region25: #{tpu_custom_call.1} parent=1 // pred_fallthru
      _
    // Predicated region
    $region26: #{tpu_custom_call.1} parent=1 // pred_check
      _
    $region27: #{tpu_custom_call.1} parent=1 // pred_check_branch
      %68 = sbr.rel (0) target = $region29
    $region28: #{tpu_custom_call.1} parent=1 // pred_region
      %69 = dma.done [#allocation6], 2048
    $region29: #{tpu_custom_call.1} parent=1 // pred_fallthru
      _
    // Predicated region
    $region30: #{tpu_custom_call.1} parent=1 // pred_check
      _
    $region31: #{tpu_custom_call.1} parent=1 // pred_check_branch
      %71 = sbr.rel (0) target = $region33
    $region32: #{tpu_custom_call.1} parent=1 // pred_region
      %72 = dma.done [#allocation6], 256
    $region33: #{tpu_custom_call.1} parent=1 // pred_fallthru
      _
    // Predicated region
    $region34: #{tpu_custom_call.1} parent=1 // pred_check
      _
    $region35: #{tpu_custom_call.1} parent=1 // pred_check_branch
      %74 = sbr.rel (0) target = $region37
    $region36: #{tpu_custom_call.1} parent=1 // pred_region
      %75 = dma.done [#allocation9], 2048
    $region37: #{tpu_custom_call.1} parent=1 // pred_fallthru
      _
    %v76 = vld [vmem:[#allocation2] sm:$0xff]
    %v77 = vld [vmem:[#allocation2 + $0x8] sm:$0xff]
    %v78 = vld [vmem:[#allocation5] sm:$0xff]
    %v79 = vld [vmem:[#allocation5 + $0x8] sm:$0xff]
    %v80 = vld [vmem:[#allocation5 + $0x10] sm:$0xff]
    %v81 = vld [vmem:[#allocation5 + $0x18] sm:$0xff]
    %v82 = vld [vmem:[#allocation5 + $0x20] sm:$0xff]
    %v83 = vld [vmem:[#allocation5 + $0x28] sm:$0xff]
    %v84 = vld [vmem:[#allocation5 + $0x30] sm:$0xff]
    %v85 = vld [vmem:[#allocation5 + $0x38] sm:$0xff]
    %v86 = vld [vmem:[#allocation5 + $0x40] sm:$0xff]
    %v87 = vld [vmem:[#allocation5 + $0x48] sm:$0xff]
    %v88 = vld [vmem:[#allocation5 + $0x50] sm:$0xff]
    %v89 = vld [vmem:[#allocation5 + $0x58] sm:$0xff]
    %v90 = vld [vmem:[#allocation5 + $0x60] sm:$0xff]
    %v91 = vld [vmem:[#allocation5 + $0x68] sm:$0xff]
    %v92 = vld [vmem:[#allocation5 + $0x70] sm:$0xff]
    %v93 = vld [vmem:[#allocation5 + $0x78] sm:$0xff]
    %v94 = vld [vmem:[%s2] sm:$0x1]
    %v96 = vlaneseq
    %v97 = vshrl.u32 %v96, 7
    %v98 = vsub.s32 0, %v97
    %v99 = vrot.slane %v94, %v98
    %101 = vmatprep.subr.mxu0 0.0
    %102 = vmatpush1.msra.mxu0 %v93
    %103 = vmatprep.subr.mxu0 0.0
    %104 = vmatpush1.msra.mxu0 %v92
    %105 = vmatprep.subr.mxu0 0.0
    %106 = vmatpush1.msra.mxu0 %v91
    %107 = vmatprep.subr.mxu0 0.0
    %108 = vmatpush1.msra.mxu0 %v90
    %109 = vmatprep.subr.mxu0 0.0
    %110 = vmatpush1.msra.mxu0 %v89
    %111 = vmatprep.subr.mxu0 0.0
    %112 = vmatpush1.msra.mxu0 %v88
    %113 = vmatprep.subr.mxu0 0.0
    %114 = vmatpush1.msra.mxu0 %v87
    %115 = vmatprep.subr.mxu0 0.0
    %116 = vmatpush1.msra.mxu0 %v86
    %117 = vmatprep.subr.mxu0 0.0
    %118 = vmatpush1.msra.mxu0 %v85
    %119 = vmatprep.subr.mxu0 0.0
    %120 = vmatpush1.msra.mxu0 %v84
    %121 = vmatprep.subr.mxu0 0.0
    %122 = vmatpush1.msra.mxu0 %v83
    %123 = vmatprep.subr.mxu0 0.0
    %124 = vmatpush1.msra.mxu0 %v82
    %125 = vmatprep.subr.mxu0 0.0
    %126 = vmatpush1.msra.mxu0 %v81
    %127 = vmatprep.subr.mxu0 0.0
    %128 = vmatpush1.msra.mxu0 %v80
    %129 = vmatprep.subr.mxu0 0.0
    %130 = vmatpush1.msra.mxu0 %v79
    %131 = vmatprep.subr.mxu0 0.0
    %132 = vmatpush1.msra.mxu0 %v78
    %133 = vmatprep.subr.mxu0 0.0
    %134 = vmatpush2.msra.mxu0 0.0
    %135 = vmatprep.subr.mxu0 0.0
    %136 = vmatpush2.msra.mxu0 0.0
    %137 = vmatprep.subr.mxu0 0.0
    %138 = vmatpush2.msra.mxu0 0.0
    %139 = vmatprep.subr.mxu0 0.0
    %140 = vmatpush2.msra.mxu0 0.0
    %141 = vmatprep.subr.mxu0 0.0
    %142 = vmatpush2.msra.mxu0 0.0
    %143 = vmatprep.subr.mxu0 0.0
    %144 = vmatpush2.msra.mxu0 0.0
    %145 = vmatprep.subr.mxu0 0.0
    %146 = vmatpush2.msra.mxu0 0.0
    %147 = vmatprep.subr.mxu0 0.0
    %148 = vmatpush2.msra.mxu0 0.0
    %149 = vmatprep.subr.mxu0 0.0
    %150 = vmatpush2.msra.mxu0 0.0
    %151 = vmatprep.subr.mxu0 0.0
    %152 = vmatpush2.msra.mxu0 0.0
    %153 = vmatprep.subr.mxu0 0.0
    %154 = vmatpush2.msra.mxu0 0.0
    %155 = vmatprep.subr.mxu0 0.0
    %156 = vmatpush2.msra.mxu0 0.0
    %157 = vmatprep.subr.mxu0 0.0
    %158 = vmatpush2.msra.mxu0 0.0
    %159 = vmatprep.subr.mxu0 0.0
    %160 = vmatpush2.msra.mxu0 0.0
    %161 = vmatprep.subr.mxu0 0.0
    %162 = vmatpush2.msra.mxu0 0.0
    %163 = vmatprep.subr.mxu0 0.0
    %164 = vmatpush2.msra.mxu0 0.0
    %165 = vmatprep.mubr.f32.mxu0 0.0
    %166 = vmatmul.mubr.f32.gmra.mxu0 %v76
    %v167 = vpop.f32.mrf.mxu0
    %v168 = vadd.f32 %v99, %v167
    %v169 = vpop.f32.mrf.mxu0
    %170 = vmatprep.mubr.f32.mxu0 0.0
    %171 = vmatmul.mubr.f32.gmra.mxu0 %v77
    %v172 = vpop.f32.mrf.mxu0
    %v173 = vadd.f32 %v99, %v172
    %v174 = vpop.f32.mrf.mxu0
    %175 = vdwg.mxu0
    %v176 = vld [vmem:[#allocation7] sm:$0xff]
    %v177 = vld [vmem:[#allocation7 + $0x8] sm:$0xff]
    %v178 = vld [vmem:[#allocation8] sm:$0xff]
    %v179 = vld [vmem:[#allocation8 + $0x8] sm:$0xff]
    %v180 = vld [vmem:[#allocation8 + $0x10] sm:$0xff]
    %v181 = vld [vmem:[#allocation8 + $0x18] sm:$0xff]
    %v182 = vld [vmem:[#allocation8 + $0x20] sm:$0xff]
    %v183 = vld [vmem:[#allocation8 + $0x28] sm:$0xff]
    %v184 = vld [vmem:[#allocation8 + $0x30] sm:$0xff]
    %v185 = vld [vmem:[#allocation8 + $0x38] sm:$0xff]
    %v186 = vld [vmem:[#allocation8 + $0x40] sm:$0xff]
    %v187 = vld [vmem:[#allocation8 + $0x48] sm:$0xff]
    %v188 = vld [vmem:[#allocation8 + $0x50] sm:$0xff]
    %v189 = vld [vmem:[#allocation8 + $0x58] sm:$0xff]
    %v190 = vld [vmem:[#allocation8 + $0x60] sm:$0xff]
    %v191 = vld [vmem:[#allocation8 + $0x68] sm:$0xff]
    %v192 = vld [vmem:[#allocation8 + $0x70] sm:$0xff]
    %v193 = vld [vmem:[#allocation8 + $0x78] sm:$0xff]
    %194 = vmatprep.subr.mxu0 0.0
    %195 = vmatpush1.msra.mxu0 %v193
    %196 = vmatprep.subr.mxu0 0.0
    %197 = vmatpush1.msra.mxu0 %v192
    %198 = vmatprep.subr.mxu0 0.0
    %199 = vmatpush1.msra.mxu0 %v191
    %200 = vmatprep.subr.mxu0 0.0
    %201 = vmatpush1.msra.mxu0 %v190
    %202 = vmatprep.subr.mxu0 0.0
    %203 = vmatpush1.msra.mxu0 %v189
    %204 = vmatprep.subr.mxu0 0.0
    %205 = vmatpush1.msra.mxu0 %v188
    %206 = vmatprep.subr.mxu0 0.0
    %207 = vmatpush1.msra.mxu0 %v187
    %208 = vmatprep.subr.mxu0 0.0
    %209 = vmatpush1.msra.mxu0 %v186
    %210 = vmatprep.subr.mxu0 0.0
    %211 = vmatpush1.msra.mxu0 %v185
    %212 = vmatprep.subr.mxu0 0.0
    %213 = vmatpush1.msra.mxu0 %v184
    %214 = vmatprep.subr.mxu0 0.0
    %215 = vmatpush1.msra.mxu0 %v183
    %216 = vmatprep.subr.mxu0 0.0
    %217 = vmatpush1.msra.mxu0 %v182
    %218 = vmatprep.subr.mxu0 0.0
    %219 = vmatpush1.msra.mxu0 %v181
    %220 = vmatprep.subr.mxu0 0.0
    %221 = vmatpush1.msra.mxu0 %v180
    %222 = vmatprep.subr.mxu0 0.0
    %223 = vmatpush1.msra.mxu0 %v179
    %224 = vmatprep.subr.mxu0 0.0
    %225 = vmatpush1.msra.mxu0 %v178
    %226 = vmatprep.subr.mxu0 0.0
    %227 = vmatpush2.msra.mxu0 0.0
    %228 = vmatprep.subr.mxu0 0.0
    %229 = vmatpush2.msra.mxu0 0.0
    %230 = vmatprep.subr.mxu0 0.0
    %231 = vmatpush2.msra.mxu0 0.0
    %232 = vmatprep.subr.mxu0 0.0
    %233 = vmatpush2.msra.mxu0 0.0
    %234 = vmatprep.subr.mxu0 0.0
    %235 = vmatpush2.msra.mxu0 0.0
    %236 = vmatprep.subr.mxu0 0.0
    %237 = vmatpush2.msra.mxu0 0.0
    %238 = vmatprep.subr.mxu0 0.0
    %239 = vmatpush2.msra.mxu0 0.0
    %240 = vmatprep.subr.mxu0 0.0
    %241 = vmatpush2.msra.mxu0 0.0
    %242 = vmatprep.subr.mxu0 0.0
    %243 = vmatpush2.msra.mxu0 0.0
    %244 = vmatprep.subr.mxu0 0.0
    %245 = vmatpush2.msra.mxu0 0.0
    %246 = vmatprep.subr.mxu0 0.0
    %247 = vmatpush2.msra.mxu0 0.0
    %248 = vmatprep.subr.mxu0 0.0
    %249 = vmatpush2.msra.mxu0 0.0
    %250 = vmatprep.subr.mxu0 0.0
    %251 = vmatpush2.msra.mxu0 0.0
    %252 = vmatprep.subr.mxu0 0.0
    %253 = vmatpush2.msra.mxu0 0.0
    %254 = vmatprep.subr.mxu0 0.0
    %255 = vmatpush2.msra.mxu0 0.0
    %256 = vmatprep.subr.mxu0 0.0
    %257 = vmatpush2.msra.mxu0 0.0
    %258 = vmatprep.mubr.f32.mxu0 0.0
    %259 = vmatmul.mubr.f32.gmra.mxu0 %v176
    %v260 = vpop.f32.mrf.mxu0
    %v261 = vadd.f32 0.0, %v260
    %v262 = vpop.f32.mrf.mxu0
    %263 = vmatprep.mubr.f32.mxu0 0.0
    %264 = vmatmul.mubr.f32.gmra.mxu0 %v177
    %v265 = vpop.f32.mrf.mxu0
    %v266 = vadd.f32 0.0, %v265
    %v267 = vpop.f32.mrf.mxu0
    %268 = vdwg.mxu0
    %v269 = vadd.f32 %v168, %v261
    %v270 = vadd.f32 %v173, %v266
    %271 = vst [vmem:[#allocation10] sm:$0xff] %v269
    %272 = vst [vmem:[#allocation10 + $0x8] sm:$0xff] %v270
    // Predicated region
    $region38: #{tpu_custom_call.1} parent=1 // pred_check
      _
    $region39: #{tpu_custom_call.1} parent=1 // pred_check_branch
      %274 = sbr.rel (0) target = $region41
    $region40: #{tpu_custom_call.1} parent=1 // pred_region
      %s276 = ssub.s32 256, 256
      %277 = vsyncadd [#allocation4], %s276
      %s278 = sshll.u32 [#allocation10], 4
      %s279 = int_to_ptr.vmem [resolvable:$true] %s278
      %284 = dma.vmem_to_hbm [thread:$0]  %s279, 256, %s5, [#allocation4], 128, 128, 8
    $region41: #{tpu_custom_call.1} parent=1 // pred_fallthru
      _
    // Predicated region
    $region42: #{tpu_custom_call.1} parent=1 // pred_check
      _
    $region43: #{tpu_custom_call.1} parent=1 // pred_check_branch
      %286 = sbr.rel (0) target = $region45
    $region44: #{tpu_custom_call.1} parent=1 // pred_region
      %287 = dma.done [#allocation4], 256
    $region45: #{tpu_custom_call.1} parent=1 // pred_fallthru
      _
    %288 = vsyncpa [#allocation3], 1
    %289 = vsyncpa [#allocation6], 1
    %290 = vsyncpa [#allocation9], 1
    %291 = vsyncpa [#allocation4], 1

</llo_original>
